<compile_context>
chip_gen: v7x
topology: tpu7x:2x2x1
jax: 0.10.0
libtpu: 0.0.40
codegen_flags: <defaults>
</compile_context>

<pallas_src>
import jax
import jax.numpy as jnp
from jax.experimental import pallas as pl
from jax.experimental.pallas import tpu as pltpu

INPUT_DIM = 32
HIDDEN_LAYERS = 64
OUTPUT_DIM = 16


def mlp_logsoftmax_kernel(x_ref, w1_ref, b1_ref, w2_ref, b2_ref, out_ref):
    # x_ref: (tile_b, IN) f32; w1_ref: (IN, H) f32; b1_ref: (1, H) f32;
    # w2_ref: (H, OUT) f32; b2_ref: (1, OUT) f32; out_ref: (tile_b, OUT) f32.
    x = x_ref[...]

    # Layer 1: MXU matmul (f32 accumulate) + bias + ReLU (VPU).
    h = jnp.dot(x, w1_ref[...], preferred_element_type=jnp.float32)
    h = jnp.maximum(h + b1_ref[...], 0.0)

    # Layer 2: MXU matmul + bias.
    logits = jnp.dot(h, w2_ref[...], preferred_element_type=jnp.float32) + b2_ref[...]

    # Numerically stable log-softmax over the class axis (EUP exp/log).
    m = jnp.max(logits, axis=-1, keepdims=True)
    shifted = logits - m
    lse = jnp.log(jnp.sum(jnp.exp(shifted), axis=-1, keepdims=True))
    out_ref[...] = (shifted - lse).astype(out_ref.dtype)


def _choose_tile_b(B):
    # Largest power-of-two tile (amortizes per-step overhead) that divides B
    # (no jnp.pad pass over x) while keeping >= 2 grid steps so both v7x
    # TensorCores get work with dimension_semantics=("parallel",).
    for t in (4096, 2048, 1024, 512, 256, 128, 64, 32, 16, 8):
        if B % t == 0 and B // t >= 2:
            return t
    if B % 8 == 0 and B <= 4096:
        return B                             # single step, no padding
    return min(1024, ((B + 7) // 8) * 8)     # last resort: pad the batch


def network_forward(x, w1, b1, w2, b2, *, tile_b=None):
    """Forward of `Network`: log_softmax(relu(x @ w1 + b1) @ w2 + b2, axis=1).

    x: (B, IN).  w1: (IN, H).  b1: (H,)/(1, H).  w2: (H, OUT).  b2: (OUT,)/(1, OUT).
    Weights are stored (in, out), i.e. transposed relative to PyTorch Linear.weight.
    """
    B, IN = x.shape
    H = w1.shape[1]
    OUT = w2.shape[1]

    x = x.astype(jnp.float32)
    w1 = w1.astype(jnp.float32)
    w2 = w2.astype(jnp.float32)
    b1 = jnp.reshape(b1, (1, H)).astype(jnp.float32)
    b2 = jnp.reshape(b2, (1, OUT)).astype(jnp.float32)

    if tile_b is None:
        tile_b = _choose_tile_b(B)

    B_pad = pl.cdiv(B, tile_b) * tile_b
    x_p = x if B_pad == B else jnp.pad(x, ((0, B_pad - B), (0, 0)))

    grid = (B_pad // tile_b,)
    cost = pl.CostEstimate(
        flops=2 * B_pad * (IN * H + H * OUT),
        transcendentals=2 * B_pad * OUT,  # exp + log
        bytes_accessed=4 * (B_pad * IN + B_pad * OUT + IN * H + H + H * OUT + OUT),
    )

    out = pl.pallas_call(
        mlp_logsoftmax_kernel,
        out_shape=jax.ShapeDtypeStruct((B_pad, OUT), jnp.float32),
        grid=grid,
        in_specs=[
            pl.BlockSpec((tile_b, IN), lambda i: (i, 0)),
            pl.BlockSpec((IN, H), lambda i: (0, 0)),   # VMEM-resident weights
            pl.BlockSpec((1, H), lambda i: (0, 0)),
            pl.BlockSpec((H, OUT), lambda i: (0, 0)),
            pl.BlockSpec((1, OUT), lambda i: (0, 0)),
        ],
        out_specs=pl.BlockSpec((tile_b, OUT), lambda i: (i, 0)),
        compiler_params=pltpu.CompilerParams(
            dimension_semantics=("parallel",)),
        cost_estimate=cost,
    )(x_p, w1, b1, w2, b2)

    return out if B_pad == B else out[:B]


def init_params(key):
    # Mirrors _init_weights_2: uniform(a=0.0, b=0.0005) for weights and biases.
    k1, k2, k3, k4 = jax.random.split(key, 4)
    # PyTorch Linear weight shape is (out, in); we store transposed (in, out).
    w1 = jax.random.uniform(k1, (HIDDEN_LAYERS, INPUT_DIM),
                            minval=0.0, maxval=0.0005, dtype=jnp.float32).T
    b1 = jax.random.uniform(k2, (HIDDEN_LAYERS,),
                            minval=0.0, maxval=0.0005, dtype=jnp.float32)
    w2 = jax.random.uniform(k3, (OUTPUT_DIM, HIDDEN_LAYERS),
                            minval=0.0, maxval=0.0005, dtype=jnp.float32).T
    b2 = jax.random.uniform(k4, (OUTPUT_DIM,),
                            minval=0.0, maxval=0.0005, dtype=jnp.float32)
    return w1, b1, w2, b2


if __name__ == "__main__":
    key = jax.random.PRNGKey(0)
    kx, kp = jax.random.split(key)
    BATCH = 512  # exercises the batch grid (tile chooser picks 256 -> 2 steps)
    x = jax.random.normal(kx, (BATCH, INPUT_DIM), dtype=jnp.float32)
    w1, b1, w2, b2 = init_params(kp)

    fwd = jax.jit(network_forward)
    out = fwd(x, w1, b1, w2, b2)
    jax.block_until_ready(out)
    assert out.shape == (BATCH, OUTPUT_DIM)

    # Full-f32 reference of the original module's math.
    ref = jax.nn.log_softmax(jnp.maximum(x @ w1 + b1, 0.0) @ w2 + b2, axis=1)
    assert jnp.allclose(out, ref, atol=1e-4, rtol=1e-4), "mismatch vs f32 reference"

    print("KERNEL_OK")
</pallas_src>

<mosaic_0001>
module attributes {stable_mosaic.version = 11 : i64} {
  func.func @mlp_logsoftmax_kernel(%arg0: i32, %arg1: memref<256x32xf32, #tpu.memory_space<vmem>>, %arg2: memref<32x64xf32, #tpu.memory_space<vmem>>, %arg3: memref<1x64xf32, #tpu.memory_space<vmem>>, %arg4: memref<64x16xf32, #tpu.memory_space<vmem>>, %arg5: memref<1x16xf32, #tpu.memory_space<vmem>>, %arg6: memref<256x16xf32, #tpu.memory_space<vmem>>) attributes {dimension_semantics = [#tpu.dimension_semantics<parallel>], iteration_bounds = array<i64: 2>, scalar_prefetch = 0 : i64, scratch_operands = 0 : i64, tpu.core_type = #tpu.core_type<tc>, window_params = [{transform_indices = @transform_0, window_bounds = array<i64: 256, 32>}, {pipeline_mode = #tpu.pipeline_mode<synchronous>, transform_indices = @transform_1, window_bounds = array<i64: 32, 64>}, {pipeline_mode = #tpu.pipeline_mode<synchronous>, transform_indices = @transform_2, window_bounds = array<i64: 1, 64>}, {pipeline_mode = #tpu.pipeline_mode<synchronous>, transform_indices = @transform_3, window_bounds = array<i64: 64, 16>}, {pipeline_mode = #tpu.pipeline_mode<synchronous>, transform_indices = @transform_4, window_bounds = array<i64: 1, 16>}, {transform_indices = @transform_5, window_bounds = array<i64: 256, 16>}]} {
    %c0 = arith.constant 0 : index
    %c0_0 = arith.constant 0 : index
    %0 = vector.load %arg1[%c0, %c0_0] : memref<256x32xf32, #tpu.memory_space<vmem>>, vector<256x32xf32>
    %c0_1 = arith.constant 0 : index
    %c0_2 = arith.constant 0 : index
    %1 = vector.load %arg2[%c0_1, %c0_2] : memref<32x64xf32, #tpu.memory_space<vmem>>, vector<32x64xf32>
    %cst = arith.constant dense<0.000000e+00> : vector<256x64xf32>
    %2 = tpu.matmul %0, %1, %cst {dimension_numbers = #tpu.dot_dimension_numbers<[1], [0], [0], [1], [0, 0, 1, 1], [], []>} : vector<256x32xf32>, vector<32x64xf32>, vector<256x64xf32> -> vector<256x64xf32>
    %c0_3 = arith.constant 0 : index
    %c0_4 = arith.constant 0 : index
    %3 = vector.load %arg3[%c0_3, %c0_4] : memref<1x64xf32, #tpu.memory_space<vmem>>, vector<1x64xf32>
    %4 = vector.broadcast %3 : vector<1x64xf32> to vector<256x64xf32>
    %5 = arith.addf %2, %4 : vector<256x64xf32>
    %cst_5 = arith.constant 0.000000e+00 : f32
    %6 = vector.broadcast %cst_5 : f32 to vector<256x64xf32>
    %7 = arith.maximumf %5, %6 : vector<256x64xf32>
    %c0_6 = arith.constant 0 : index
    %c0_7 = arith.constant 0 : index
    %8 = vector.load %arg4[%c0_6, %c0_7] : memref<64x16xf32, #tpu.memory_space<vmem>>, vector<64x16xf32>
    %cst_8 = arith.constant dense<0.000000e+00> : vector<256x16xf32>
    %9 = tpu.matmul %7, %8, %cst_8 {dimension_numbers = #tpu.dot_dimension_numbers<[1], [0], [0], [1], [0, 0, 1, 1], [], []>} : vector<256x64xf32>, vector<64x16xf32>, vector<256x16xf32> -> vector<256x16xf32>
    %c0_9 = arith.constant 0 : index
    %c0_10 = arith.constant 0 : index
    %10 = vector.load %arg5[%c0_9, %c0_10] : memref<1x16xf32, #tpu.memory_space<vmem>>, vector<1x16xf32>
    %11 = vector.broadcast %10 : vector<1x16xf32> to vector<256x16xf32>
    %12 = arith.addf %9, %11 : vector<256x16xf32>
    %cst_11 = arith.constant dense<0xFF800000> : vector<256xf32>
    %13 = vector.multi_reduction <maximumf>, %12, %cst_11 [1] : vector<256x16xf32> to vector<256xf32>
    %14 = vector.shape_cast %13 : vector<256xf32> to vector<256x1xf32>
    %15 = vector.broadcast %14 : vector<256x1xf32> to vector<256x16xf32>
    %16 = arith.subf %12, %15 : vector<256x16xf32>
    %17 = math.exp %16 : vector<256x16xf32>
    %cst_12 = arith.constant dense<0.000000e+00> : vector<256xf32>
    %18 = vector.multi_reduction <add>, %17, %cst_12 [1] : vector<256x16xf32> to vector<256xf32>
    %19 = vector.shape_cast %18 : vector<256xf32> to vector<256x1xf32>
    %20 = math.log %19 : vector<256x1xf32>
    %21 = vector.broadcast %20 : vector<256x1xf32> to vector<256x16xf32>
    %22 = arith.subf %16, %21 : vector<256x16xf32>
    %c0_13 = arith.constant 0 : index
    %c0_14 = arith.constant 0 : index
    %23 = vector.load %arg6[%c0_13, %c0_14] : memref<256x16xf32, #tpu.memory_space<vmem>>, vector<256x16xf32>
    tpu.vector_store %arg6[%c0_13, %c0_14], %22 {strides = array<i32>} : memref<256x16xf32, #tpu.memory_space<vmem>>, vector<256x16xf32>,
    return
  }
  func.func @transform_0(%arg0: i32) -> (i32, i32) {
    %c0_i32 = arith.constant 0 : i32
    %c0_i32_0 = arith.constant 0 : i32
    return %arg0, %c0_i32 : i32, i32
  }
  func.func @transform_1(%arg0: i32) -> (i32, i32) {
    %c0_i32 = arith.constant 0 : i32
    %c0_i32_0 = arith.constant 0 : i32
    %c0_i32_1 = arith.constant 0 : i32
    return %c0_i32, %c0_i32_0 : i32, i32
  }
  func.func @transform_2(%arg0: i32) -> (i32, i32) {
    %c0_i32 = arith.constant 0 : i32
    %c0_i32_0 = arith.constant 0 : i32
    %c0_i32_1 = arith.constant 0 : i32
    return %c0_i32, %c0_i32_0 : i32, i32
  }
  func.func @transform_3(%arg0: i32) -> (i32, i32) {
    %c0_i32 = arith.constant 0 : i32
    %c0_i32_0 = arith.constant 0 : i32
    %c0_i32_1 = arith.constant 0 : i32
    return %c0_i32, %c0_i32_0 : i32, i32
  }
  func.func @transform_4(%arg0: i32) -> (i32, i32) {
    %c0_i32 = arith.constant 0 : i32
    %c0_i32_0 = arith.constant 0 : i32
    %c0_i32_1 = arith.constant 0 : i32
    return %c0_i32, %c0_i32_0 : i32, i32
  }
  func.func @transform_5(%arg0: i32) -> (i32, i32) {
    %c0_i32 = arith.constant 0 : i32
    %c0_i32_0 = arith.constant 0 : i32
    return %arg0, %c0_i32 : i32, i32
  }
}

</mosaic_0001>

<llo_original>
// kernel: network_forward.1
$region0: #{network_forward.1}
  #allocation0 [shape = 'u32[]', space=smem, size = 0x4, offset = 0x4, fixed_abs, tag = 'smem constant byte address 0x4 - core index']
  #allocation1 [shape = 'u32[144,128]{1,0:T(1,128)}', space=vmem, size = 0x12000, scoped, tag = 'internal scratch']
  %s0 = inlined_call_operand.vmem [shape: f32[512,32], index: 0, kind: input, shape index: {}]
  %s1 = inlined_call_operand.vmem [shape: f32[32,64], index: 1, kind: input, shape index: {}]
  %s2 = inlined_call_operand.vmem [shape: f32[1,64], index: 2, kind: input, shape index: {}]
  %s3 = inlined_call_operand.vmem [shape: f32[64,16], index: 3, kind: input, shape index: {}]
  %s4 = inlined_call_operand.vmem [shape: f32[1,16], index: 4, kind: input, shape index: {}]
  %s5 = inlined_call_operand.vmem [shape: f32[512,16], index: 5, kind: output, shape index: {}]
  %s6 = sld [smem:[#allocation0]]
  $region53: #{network_forward.1} parent=0
    _
  %s8 = ssub.s32 1, %s6
  %s9 = scalar_select 0, %s8, %s6
  loop: start=0, step=1, limit=4
  $region2: #{network_forward.1} parent=0 // loop_pre_header
    _
  $region3: #{network_forward.1} parent=0 // loop_header
    %s11 = sphi 0, %s15
    %p12 = scmp.ge.s32.totalorder %s11, 4
    %s21 = sphi 0, %s23
    %s24 = sphi 0, %s21
    %s25 = sphi 0, %s24
    %s41 = sphi 0, %s25
    %s45 = sphi 0, %s45
    %s47 = sphi 0, %s45
    %s48 = sphi 0, %s47
    %s62 = sphi 0, %s48
    %s66 = sphi 0, %s66
    %s68 = sphi 0, %s66
    %s69 = sphi 0, %s68
    %s83 = sphi 0, %s69
    %s87 = sphi 0, %s87
    %s89 = sphi 0, %s87
    %s90 = sphi 0, %s89
    %s104 = sphi 0, %s90
    %s108 = sphi 0, %s108
    %s110 = sphi 0, %s108
    %s111 = sphi 0, %s110
    %s125 = sphi 0, %s111
    %s131 = sphi 0, %s133
    %s134 = sphi 0, %s131
    %s135 = sphi 0, %s134
    %s151 = sphi 0, %s135
  $region4: #{network_forward.1} parent=0 // loop_header_branch
    %14 = sbr.rel (%p12) target = $region8
  $region5: #{network_forward.1} parent=0 // loop_body
    %s16 = ssub.s32 %s11, 1
    %s17 = ssub.s32 %s11, 2
    %s18 = sadd.s32 %s11, 1
    %s19 = ssub.s32 %s11, %s18
    %p20 = scmp.eq.s32.totalorder %s19, 0
    %s22 = sadd.s32 %s21, 1
    %s23 = scalar_select %p20, %s21, %s22
    %p26 = pneg %p20
    %p27 = scmp.eq.s32.totalorder %s11, 1
    %p28 = por %p26, %p27
    %p29 = scmp.ne.s32.totalorder %s21, %s24
    %p30 = scmp.eq.s32.totalorder %s11, 0
    %p31 = por %p29, %p30
    %p32 = scmp.ne.s32.totalorder %s21, %s24
    %p33 = scmp.eq.s32.totalorder %s16, 1
    %p34 = por %p32, %p33
    %p35 = scmp.ne.s32.totalorder %s24, %s25
    %p36 = scmp.eq.s32.totalorder %s16, 0
    %p37 = por %p35, %p36
    %p38 = scmp.ne.s32.totalorder %s24, %s25
    %p39 = scmp.eq.s32.totalorder %s17, 1
    %p40 = por %p38, %p39
    %p42 = scmp.ne.s32.totalorder %s25, %s41
    %p43 = scmp.eq.s32.totalorder %s17, 0
    %p44 = por %p42, %p43
    %s46 = sadd.s32 %s45, 1
    %p49 = scmp.eq.s32.totalorder %s11, 1
    %p50 = scmp.ne.s32.totalorder %s45, %s47
    %p51 = scmp.eq.s32.totalorder %s11, 0
    %p52 = por %p50, %p51
    %p53 = scmp.ne.s32.totalorder %s45, %s47
    %p54 = scmp.eq.s32.totalorder %s16, 1
    %p55 = por %p53, %p54
    %p56 = scmp.ne.s32.totalorder %s47, %s48
    %p57 = scmp.eq.s32.totalorder %s16, 0
    %p58 = por %p56, %p57
    %p59 = scmp.ne.s32.totalorder %s47, %s48
    %p60 = scmp.eq.s32.totalorder %s17, 1
    %p61 = por %p59, %p60
    %p63 = scmp.ne.s32.totalorder %s48, %s62
    %p64 = scmp.eq.s32.totalorder %s17, 0
    %p65 = por %p63, %p64
    %s67 = sadd.s32 %s66, 1
    %p70 = scmp.eq.s32.totalorder %s11, 1
    %p71 = scmp.ne.s32.totalorder %s66, %s68
    %p72 = scmp.eq.s32.totalorder %s11, 0
    %p73 = por %p71, %p72
    %p74 = scmp.ne.s32.totalorder %s66, %s68
    %p75 = scmp.eq.s32.totalorder %s16, 1
    %p76 = por %p74, %p75
    %p77 = scmp.ne.s32.totalorder %s68, %s69
    %p78 = scmp.eq.s32.totalorder %s16, 0
    %p79 = por %p77, %p78
    %p80 = scmp.ne.s32.totalorder %s68, %s69
    %p81 = scmp.eq.s32.totalorder %s17, 1
    %p82 = por %p80, %p81
    %p84 = scmp.ne.s32.totalorder %s69, %s83
    %p85 = scmp.eq.s32.totalorder %s17, 0
    %p86 = por %p84, %p85
    %s88 = sadd.s32 %s87, 1
    %p91 = scmp.eq.s32.totalorder %s11, 1
    %p92 = scmp.ne.s32.totalorder %s87, %s89
    %p93 = scmp.eq.s32.totalorder %s11, 0
    %p94 = por %p92, %p93
    %p95 = scmp.ne.s32.totalorder %s87, %s89
    %p96 = scmp.eq.s32.totalorder %s16, 1
    %p97 = por %p95, %p96
    %p98 = scmp.ne.s32.totalorder %s89, %s90
    %p99 = scmp.eq.s32.totalorder %s16, 0
    %p100 = por %p98, %p99
    %p101 = scmp.ne.s32.totalorder %s89, %s90
    %p102 = scmp.eq.s32.totalorder %s17, 1
    %p103 = por %p101, %p102
    %p105 = scmp.ne.s32.totalorder %s90, %s104
    %p106 = scmp.eq.s32.totalorder %s17, 0
    %p107 = por %p105, %p106
    %s109 = sadd.s32 %s108, 1
    %p112 = scmp.eq.s32.totalorder %s11, 1
    %p113 = scmp.ne.s32.totalorder %s108, %s110
    %p114 = scmp.eq.s32.totalorder %s11, 0
    %p115 = por %p113, %p114
    %p116 = scmp.ne.s32.totalorder %s108, %s110
    %p117 = scmp.eq.s32.totalorder %s16, 1
    %p118 = por %p116, %p117
    %p119 = scmp.ne.s32.totalorder %s110, %s111
    %p120 = scmp.eq.s32.totalorder %s16, 0
    %p121 = por %p119, %p120
    %p122 = scmp.ne.s32.totalorder %s110, %s111
    %p123 = scmp.eq.s32.totalorder %s17, 1
    %p124 = por %p122, %p123
    %p126 = scmp.ne.s32.totalorder %s111, %s125
    %p127 = scmp.eq.s32.totalorder %s17, 0
    %p128 = por %p126, %p127
    %s129 = ssub.s32 %s11, %s18
    %p130 = scmp.eq.s32.totalorder %s129, 0
    %s132 = sadd.s32 %s131, 1
    %s133 = scalar_select %p130, %s131, %s132
    %p136 = pneg %p130
    %p137 = scmp.eq.s32.totalorder %s11, 1
    %p138 = por %p136, %p137
    %p139 = scmp.ne.s32.totalorder %s131, %s134
    %p140 = scmp.eq.s32.totalorder %s11, 0
    %p141 = por %p139, %p140
    %p142 = scmp.ne.s32.totalorder %s131, %s134
    %p143 = scmp.eq.s32.totalorder %s16, 1
    %p144 = por %p142, %p143
    %p145 = scmp.ne.s32.totalorder %s134, %s135
    %p146 = scmp.eq.s32.totalorder %s16, 0
    %p147 = por %p145, %p146
    %p148 = scmp.ne.s32.totalorder %s134, %s135
    %p149 = scmp.eq.s32.totalorder %s17, 1
    %p150 = por %p148, %p149
    %p152 = scmp.ne.s32.totalorder %s135, %s151
    %p153 = scmp.eq.s32.totalorder %s17, 0
    %p154 = por %p152, %p153
    %p155 = scmp.le.s32.totalorder 1, %s11
    %p156 = scmp.lt.s32.totalorder %s11, 3
    %p157 = pnand %p155, %p156
    %p158 = pneg %p157
    // Predicated region
    $region9: #{network_forward.1} parent=5 // pred_check
      _
    $region10: #{network_forward.1} parent=5 // pred_check_branch
      %160 = sbr.rel (%p157) target = $region12
    $region11: #{network_forward.1} parent=5 // pred_region
      %s161 = ssub.s32 %s11, 1
      // Predicated region
      $region13: #{network_forward.1} parent=11 // pred_check
        %p162 = pneg %p58
      $region14: #{network_forward.1} parent=11 // pred_check_branch
        %164 = sbr.rel (%p162) target = $region16
      $region15: #{network_forward.1} parent=11 // pred_region
        _
      $region16: #{network_forward.1} parent=11 // pred_fallthru
        _
      // Predicated region
      $region17: #{network_forward.1} parent=11 // pred_check
        %p165 = pneg %p79
      $region18: #{network_forward.1} parent=11 // pred_check_branch
        %167 = sbr.rel (%p165) target = $region20
      $region19: #{network_forward.1} parent=11 // pred_region
        _
      $region20: #{network_forward.1} parent=11 // pred_fallthru
        _
      // Predicated region
      $region21: #{network_forward.1} parent=11 // pred_check
        %p168 = pneg %p100
      $region22: #{network_forward.1} parent=11 // pred_check_branch
        %170 = sbr.rel (%p168) target = $region24
      $region23: #{network_forward.1} parent=11 // pred_region
        _
      $region24: #{network_forward.1} parent=11 // pred_fallthru
        _
      // Predicated region
      $region25: #{network_forward.1} parent=11 // pred_check
        %p171 = pneg %p121
      $region26: #{network_forward.1} parent=11 // pred_check_branch
        %173 = sbr.rel (%p171) target = $region28
      $region27: #{network_forward.1} parent=11 // pred_region
        _
      $region28: #{network_forward.1} parent=11 // pred_fallthru
        _
    $region12: #{network_forward.1} parent=5 // pred_fallthru
      _
    %p174 = scmp.lt.s32.totalorder %s11, 2
    // Predicated region
    $region29: #{network_forward.1} parent=5 // pred_check
      %p175 = pneg %p174
    $region30: #{network_forward.1} parent=5 // pred_check_branch
      %177 = sbr.rel (%p175) target = $region32
    $region31: #{network_forward.1} parent=5 // pred_region
      // Predicated region
      $region33: #{network_forward.1} parent=31 // pred_check
        %p178 = pneg %p31
      $region34: #{network_forward.1} parent=31 // pred_check_branch
        %180 = sbr.rel (%p178) target = $region36
      $region35: #{network_forward.1} parent=31 // pred_region
        %s181 = smul.u32 32, %s11
        %p182 = scmp.lt.s32.totalorder %s181, 63
        %s183 = scalar_select %p182, %s181, 63
        %s184 = smul.addr %s183, 8
        %s185 = scalar_lea.vmem %s0, %s184
        %s186 = smul.u32 32, %s11
      $region36: #{network_forward.1} parent=31 // pred_fallthru
        _
    $region32: #{network_forward.1} parent=5 // pred_fallthru
      _
    %p187 = scmp.le.s32.totalorder 1, %s11
    %p188 = scmp.lt.s32.totalorder %s11, 3
    %p189 = pnand %p187, %p188
    %p190 = pneg %p189
    // Predicated region
    $region37: #{network_forward.1} parent=5 // pred_check
      _
    $region38: #{network_forward.1} parent=5 // pred_check_branch
      %192 = sbr.rel (%p189) target = $region40
    $region39: #{network_forward.1} parent=5 // pred_region
      %s193 = ssub.s32 %s11, 1
      %s194 = smul.u32 32, %s16
      %p195 = scmp.lt.s32.totalorder %s194, 63
      %s196 = scalar_select %p195, %s194, 63
      %s197 = smul.addr %s196, 8
      %s198 = scalar_lea.vmem %s0, %s197
      %p199 = pneg %p37
      %p200 = pneg %p34
      %p201 = pneg %p58
      %p202 = pneg %p55
      %p203 = pneg %p79
      %p204 = pneg %p76
      %p205 = pneg %p100
      %p206 = pneg %p97
      %p207 = pneg %p121
      %p208 = pneg %p118
      %p209 = pneg %p147
      %p210 = pneg %p144
      %s211 = smul.u32 32, %s16
      %p212 = scmp.lt.s32.totalorder %s211, 63
      %s213 = scalar_select %p212, %s211, 63
      %s214 = smul.addr %s213, 8
      %s215 = scalar_lea.vmem %s5, %s214
      %s216 = smul.u32 32, %s16
      %p217 = scmp.lt.s32.totalorder %s216, 63
      %s218 = scalar_select %p217, %s216, 63
      %s219 = smul.addr %s218, 8
      %s220 = scalar_lea.vmem %s0, %s219
      %s221 = smul.u32 32, %s16
      %s222 = smul.u32 32, %s16
      %p223 = scmp.lt.s32.totalorder %s222, 63
      %s224 = scalar_select %p223, %s222, 63
      %s225 = smul.addr %s224, 8
      %s226 = scalar_lea.vmem %s5, %s225
      %s227 = smul.u32 32, %s16
      %v228 = vld [vmem:[%s220] sm:$0xff]
      %v229 = vld [vmem:[%s220 + $0x8] sm:$0xff]
      %v230 = vld [vmem:[%s220 + $0x10] sm:$0xff]
      %v231 = vld [vmem:[%s220 + $0x18] sm:$0xff]
      %v232 = vld [vmem:[%s220 + $0x20] sm:$0xff]
      %v233 = vld [vmem:[%s220 + $0x28] sm:$0xff]
      %v234 = vld [vmem:[%s220 + $0x30] sm:$0xff]
      %v235 = vld [vmem:[%s220 + $0x38] sm:$0xff]
      %v236 = vld [vmem:[%s220 + $0x40] sm:$0xff]
      %v237 = vld [vmem:[%s220 + $0x48] sm:$0xff]
      %v238 = vld [vmem:[%s220 + $0x50] sm:$0xff]
      %v239 = vld [vmem:[%s220 + $0x58] sm:$0xff]
      %v240 = vld [vmem:[%s220 + $0x60] sm:$0xff]
      %v241 = vld [vmem:[%s220 + $0x68] sm:$0xff]
      %v242 = vld [vmem:[%s220 + $0x70] sm:$0xff]
      %v243 = vld [vmem:[%s220 + $0x78] sm:$0xff]
      %v244 = vld [vmem:[%s220 + $0x80] sm:$0xff]
      %v245 = vld [vmem:[%s220 + $0x88] sm:$0xff]
      %v246 = vld [vmem:[%s220 + $0x90] sm:$0xff]
      %v247 = vld [vmem:[%s220 + $0x98] sm:$0xff]
      %v248 = vld [vmem:[%s220 + $0xa0] sm:$0xff]
      %v249 = vld [vmem:[%s220 + $0xa8] sm:$0xff]
      %v250 = vld [vmem:[%s220 + $0xb0] sm:$0xff]
      %v251 = vld [vmem:[%s220 + $0xb8] sm:$0xff]
      %v252 = vld [vmem:[%s220 + $0xc0] sm:$0xff]
      %v253 = vld [vmem:[%s220 + $0xc8] sm:$0xff]
      %v254 = vld [vmem:[%s220 + $0xd0] sm:$0xff]
      %v255 = vld [vmem:[%s220 + $0xd8] sm:$0xff]
      %v256 = vld [vmem:[%s220 + $0xe0] sm:$0xff]
      %v257 = vld [vmem:[%s220 + $0xe8] sm:$0xff]
      %v258 = vld [vmem:[%s220 + $0xf0] sm:$0xff]
      %v259 = vld [vmem:[%s220 + $0xf8] sm:$0xff]
      %v260 = vld [vmem:[%s1] sm:$0xff]
      %v261 = vld [vmem:[%s1 + $0x8] sm:$0xff]
      %v262 = vld [vmem:[%s1 + $0x10] sm:$0xff]
      %v263 = vld [vmem:[%s1 + $0x18] sm:$0xff]
      %v264 = vld [vmem:[%s2] sm:$0x1]
      %v266 = vlaneseq
      %v267 = vshrl.u32 %v266, 7
      %v268 = vsub.s32 0, %v267
      %v269 = vrot.slane %v264, %v268
      %vm271 = vcmask 261120
      %v273 = vsel %vm271, %v228, 0
      %v276 = vsel %vm271, %v229, 0
      %v279 = vsel %vm271, %v230, 0
      %v282 = vsel %vm271, %v231, 0
      %v285 = vsel %vm271, %v232, 0
      %v288 = vsel %vm271, %v233, 0
      %v291 = vsel %vm271, %v234, 0
      %v294 = vsel %vm271, %v235, 0
      %v297 = vsel %vm271, %v236, 0
      %v300 = vsel %vm271, %v237, 0
      %v303 = vsel %vm271, %v238, 0
      %v306 = vsel %vm271, %v239, 0
      %v309 = vsel %vm271, %v240, 0
      %v312 = vsel %vm271, %v241, 0
      %v315 = vsel %vm271, %v242, 0
      %v318 = vsel %vm271, %v243, 0
      %v321 = vsel %vm271, %v244, 0
      %v324 = vsel %vm271, %v245, 0
      %v327 = vsel %vm271, %v246, 0
      %v330 = vsel %vm271, %v247, 0
      %v333 = vsel %vm271, %v248, 0
      %v336 = vsel %vm271, %v249, 0
      %v339 = vsel %vm271, %v250, 0
      %v342 = vsel %vm271, %v251, 0
      %v345 = vsel %vm271, %v252, 0
      %v348 = vsel %vm271, %v253, 0
      %v351 = vsel %vm271, %v254, 0
      %v354 = vsel %vm271, %v255, 0
      %v357 = vsel %vm271, %v256, 0
      %v360 = vsel %vm271, %v257, 0
      %v363 = vsel %vm271, %v258, 0
      %v366 = vsel %vm271, %v259, 0
      %368 = vmatprep.subr.mxu0 0.0
      %369 = vmatpush1.msra.mxu0 %v260
      %370 = vmatprep.subr.mxu0 0.0
      %371 = vmatpush1.msra.mxu0 %v261
      %372 = vmatprep.subr.mxu0 0.0
      %373 = vmatpush1.msra.mxu0 %v262
      %374 = vmatprep.subr.mxu0 0.0
      %375 = vmatpush1.msra.mxu0 %v263
      %376 = vmatprep.subr.mxu0 0.0
      %377 = vmatpush1.msra.mxu0 0.0
      %378 = vmatprep.subr.mxu0 0.0
      %379 = vmatpush1.msra.mxu0 0.0
      %380 = vmatprep.subr.mxu0 0.0
      %381 = vmatpush1.msra.mxu0 0.0
      %382 = vmatprep.subr.mxu0 0.0
      %383 = vmatpush1.msra.mxu0 0.0
      %384 = vmatprep.subr.mxu0 0.0
      %385 = vmatpush1.msra.mxu0 0.0
      %386 = vmatprep.subr.mxu0 0.0
      %387 = vmatpush1.msra.mxu0 0.0
      %388 = vmatprep.subr.mxu0 0.0
      %389 = vmatpush1.msra.mxu0 0.0
      %390 = vmatprep.subr.mxu0 0.0
      %391 = vmatpush1.msra.mxu0 0.0
      %392 = vmatprep.subr.mxu0 0.0
      %393 = vmatpush1.msra.mxu0 0.0
      %394 = vmatprep.subr.mxu0 0.0
      %395 = vmatpush1.msra.mxu0 0.0
      %396 = vmatprep.subr.mxu0 0.0
      %397 = vmatpush1.msra.mxu0 0.0
      %398 = vmatprep.subr.mxu0 0.0
      %399 = vmatpush1.msra.mxu0 0.0
      %400 = vmatprep.subr.mxu0 0.0
      %401 = vmatpush1.msra.mxu0 0.0
      %402 = vmatprep.subr.mxu0 0.0
      %403 = vmatpush1.msra.mxu0 0.0
      %404 = vmatprep.subr.mxu0 0.0
      %405 = vmatpush1.msra.mxu0 0.0
      %406 = vmatprep.subr.mxu0 0.0
      %407 = vmatpush1.msra.mxu0 0.0
      %408 = vmatprep.subr.mxu0 0.0
      %409 = vmatpush1.msra.mxu0 0.0
      %410 = vmatprep.subr.mxu0 0.0
      %411 = vmatpush1.msra.mxu0 0.0
      %412 = vmatprep.subr.mxu0 0.0
      %413 = vmatpush1.msra.mxu0 0.0
      %414 = vmatprep.subr.mxu0 0.0
      %415 = vmatpush1.msra.mxu0 0.0
      %416 = vmatprep.subr.mxu0 0.0
      %417 = vmatpush1.msra.mxu0 0.0
      %418 = vmatprep.subr.mxu0 0.0
      %419 = vmatpush1.msra.mxu0 0.0
      %420 = vmatprep.subr.mxu0 0.0
      %421 = vmatpush1.msra.mxu0 0.0
      %422 = vmatprep.subr.mxu0 0.0
      %423 = vmatpush1.msra.mxu0 0.0
      %424 = vmatprep.subr.mxu0 0.0
      %425 = vmatpush1.msra.mxu0 0.0
      %426 = vmatprep.subr.mxu0 0.0
      %427 = vmatpush1.msra.mxu0 0.0
      %428 = vmatprep.subr.mxu0 0.0
      %429 = vmatpush1.msra.mxu0 0.0
      %430 = vmatprep.subr.mxu0 0.0
      %431 = vmatpush1.msra.mxu0 0.0
      %432 = vmatprep.mubr.f32.mxu0 0.0
      %433 = vmatmul.mubr.f32.gmra.mrb[0].mxu0 %v273
      %v434 = vpop.f32.mrb[0].mxu0
      %v435 = vadd.f32 %v269, %v434
      %v436 = vpop.f32.mrb[0].mxu0
      %437 = vmatprep.mubr.f32.mxu0 0.0
      %438 = vmatmul.mubr.f32.gmra.mrb[0].mxu0 %v276
      %v439 = vpop.f32.mrb[0].mxu0
      %v440 = vadd.f32 %v269, %v439
      %v441 = vpop.f32.mrb[0].mxu0
      %442 = vmatprep.mubr.f32.mxu0 0.0
      %443 = vmatmul.mubr.f32.gmra.mrb[0].mxu0 %v279
      %v444 = vpop.f32.mrb[0].mxu0
      %v445 = vadd.f32 %v269, %v444
      %v446 = vpop.f32.mrb[0].mxu0
      %447 = vmatprep.mubr.f32.mxu0 0.0
      %448 = vmatmul.mubr.f32.gmra.mrb[0].mxu0 %v282
      %v449 = vpop.f32.mrb[0].mxu0
      %v450 = vadd.f32 %v269, %v449
      %v451 = vpop.f32.mrb[0].mxu0
      %452 = vmatprep.mubr.f32.mxu0 0.0
      %453 = vmatmul.mubr.f32.gmra.mrb[0].mxu0 %v285
      %v454 = vpop.f32.mrb[0].mxu0
      %v455 = vadd.f32 %v269, %v454
      %v456 = vpop.f32.mrb[0].mxu0
      %457 = vmatprep.mubr.f32.mxu0 0.0
      %458 = vmatmul.mubr.f32.gmra.mrb[0].mxu0 %v288
      %v459 = vpop.f32.mrb[0].mxu0
      %v460 = vadd.f32 %v269, %v459
      %v461 = vpop.f32.mrb[0].mxu0
      %462 = vmatprep.mubr.f32.mxu0 0.0
      %463 = vmatmul.mubr.f32.gmra.mrb[0].mxu0 %v291
      %v464 = vpop.f32.mrb[0].mxu0
      %v465 = vadd.f32 %v269, %v464
      %v466 = vpop.f32.mrb[0].mxu0
      %467 = vmatprep.mubr.f32.mxu0 0.0
      %468 = vmatmul.mubr.f32.gmra.mrb[0].mxu0 %v294
      %v469 = vpop.f32.mrb[0].mxu0
      %v470 = vadd.f32 %v269, %v469
      %v471 = vpop.f32.mrb[0].mxu0
      %472 = vmatprep.mubr.f32.mxu0 0.0
      %473 = vmatmul.mubr.f32.gmra.mrb[0].mxu0 %v297
      %v474 = vpop.f32.mrb[0].mxu0
      %v475 = vadd.f32 %v269, %v474
      %v476 = vpop.f32.mrb[0].mxu0
      %477 = vmatprep.mubr.f32.mxu0 0.0
      %478 = vmatmul.mubr.f32.gmra.mrb[0].mxu0 %v300
      %v479 = vpop.f32.mrb[0].mxu0
      %v480 = vadd.f32 %v269, %v479
      %v481 = vpop.f32.mrb[0].mxu0
      %482 = vmatprep.mubr.f32.mxu0 0.0
      %483 = vmatmul.mubr.f32.gmra.mrb[0].mxu0 %v303
      %v484 = vpop.f32.mrb[0].mxu0
      %v485 = vadd.f32 %v269, %v484
      %v486 = vpop.f32.mrb[0].mxu0
      %487 = vmatprep.mubr.f32.mxu0 0.0
      %488 = vmatmul.mubr.f32.gmra.mrb[0].mxu0 %v306
      %v489 = vpop.f32.mrb[0].mxu0
      %v490 = vadd.f32 %v269, %v489
      %v491 = vpop.f32.mrb[0].mxu0
      %492 = vmatprep.mubr.f32.mxu0 0.0
      %493 = vmatmul.mubr.f32.gmra.mrb[0].mxu0 %v309
      %v494 = vpop.f32.mrb[0].mxu0
      %v495 = vadd.f32 %v269, %v494
      %v496 = vpop.f32.mrb[0].mxu0
      %497 = vmatprep.mubr.f32.mxu0 0.0
      %498 = vmatmul.mubr.f32.gmra.mrb[0].mxu0 %v312
      %v499 = vpop.f32.mrb[0].mxu0
      %v500 = vadd.f32 %v269, %v499
      %v501 = vpop.f32.mrb[0].mxu0
      %502 = vmatprep.mubr.f32.mxu0 0.0
      %503 = vmatmul.mubr.f32.gmra.mrb[0].mxu0 %v315
      %v504 = vpop.f32.mrb[0].mxu0
      %v505 = vadd.f32 %v269, %v504
      %v506 = vpop.f32.mrb[0].mxu0
      %507 = vmatprep.mubr.f32.mxu0 0.0
      %508 = vmatmul.mubr.f32.gmra.mrb[0].mxu0 %v318
      %v509 = vpop.f32.mrb[0].mxu0
      %v510 = vadd.f32 %v269, %v509
      %v511 = vpop.f32.mrb[0].mxu0
      %512 = vmatprep.mubr.f32.mxu0 0.0
      %513 = vmatmul.mubr.f32.gmra.mrb[0].mxu0 %v321
      %v514 = vpop.f32.mrb[0].mxu0
      %v515 = vadd.f32 %v269, %v514
      %v516 = vpop.f32.mrb[0].mxu0
      %517 = vmatprep.mubr.f32.mxu0 0.0
      %518 = vmatmul.mubr.f32.gmra.mrb[0].mxu0 %v324
      %v519 = vpop.f32.mrb[0].mxu0
      %v520 = vadd.f32 %v269, %v519
      %v521 = vpop.f32.mrb[0].mxu0
      %522 = vmatprep.mubr.f32.mxu0 0.0
      %523 = vmatmul.mubr.f32.gmra.mrb[0].mxu0 %v327
      %v524 = vpop.f32.mrb[0].mxu0
      %v525 = vadd.f32 %v269, %v524
      %v526 = vpop.f32.mrb[0].mxu0
      %527 = vmatprep.mubr.f32.mxu0 0.0
      %528 = vmatmul.mubr.f32.gmra.mrb[0].mxu0 %v330
      %v529 = vpop.f32.mrb[0].mxu0
      %v530 = vadd.f32 %v269, %v529
      %v531 = vpop.f32.mrb[0].mxu0
      %532 = vmatprep.mubr.f32.mxu0 0.0
      %533 = vmatmul.mubr.f32.gmra.mrb[0].mxu0 %v333
      %v534 = vpop.f32.mrb[0].mxu0
      %v535 = vadd.f32 %v269, %v534
      %v536 = vpop.f32.mrb[0].mxu0
      %537 = vmatprep.mubr.f32.mxu0 0.0
      %538 = vmatmul.mubr.f32.gmra.mrb[0].mxu0 %v336
      %v539 = vpop.f32.mrb[0].mxu0
      %v540 = vadd.f32 %v269, %v539
      %v541 = vpop.f32.mrb[0].mxu0
      %542 = vmatprep.mubr.f32.mxu0 0.0
      %543 = vmatmul.mubr.f32.gmra.mrb[0].mxu0 %v339
      %v544 = vpop.f32.mrb[0].mxu0
      %v545 = vadd.f32 %v269, %v544
      %v546 = vpop.f32.mrb[0].mxu0
      %547 = vmatprep.mubr.f32.mxu0 0.0
      %548 = vmatmul.mubr.f32.gmra.mrb[0].mxu0 %v342
      %v549 = vpop.f32.mrb[0].mxu0
      %v550 = vadd.f32 %v269, %v549
      %v551 = vpop.f32.mrb[0].mxu0
      %552 = vmatprep.mubr.f32.mxu0 0.0
      %553 = vmatmul.mubr.f32.gmra.mrb[0].mxu0 %v345
      %v554 = vpop.f32.mrb[0].mxu0
      %v555 = vadd.f32 %v269, %v554
      %v556 = vpop.f32.mrb[0].mxu0
      %557 = vmatprep.mubr.f32.mxu0 0.0
      %558 = vmatmul.mubr.f32.gmra.mrb[0].mxu0 %v348
      %v559 = vpop.f32.mrb[0].mxu0
      %v560 = vadd.f32 %v269, %v559
      %v561 = vpop.f32.mrb[0].mxu0
      %562 = vmatprep.mubr.f32.mxu0 0.0
      %563 = vmatmul.mubr.f32.gmra.mrb[0].mxu0 %v351
      %v564 = vpop.f32.mrb[0].mxu0
      %v565 = vadd.f32 %v269, %v564
      %v566 = vpop.f32.mrb[0].mxu0
      %567 = vmatprep.mubr.f32.mxu0 0.0
      %568 = vmatmul.mubr.f32.gmra.mrb[0].mxu0 %v354
      %v569 = vpop.f32.mrb[0].mxu0
      %v570 = vadd.f32 %v269, %v569
      %v571 = vpop.f32.mrb[0].mxu0
      %572 = vmatprep.mubr.f32.mxu0 0.0
      %573 = vmatmul.mubr.f32.gmra.mrb[0].mxu0 %v357
      %v574 = vpop.f32.mrb[0].mxu0
      %v575 = vadd.f32 %v269, %v574
      %v576 = vpop.f32.mrb[0].mxu0
      %577 = vmatprep.mubr.f32.mxu0 0.0
      %578 = vmatmul.mubr.f32.gmra.mrb[0].mxu0 %v360
      %v579 = vpop.f32.mrb[0].mxu0
      %v580 = vadd.f32 %v269, %v579
      %v581 = vpop.f32.mrb[0].mxu0
      %582 = vmatprep.mubr.f32.mxu0 0.0
      %583 = vmatmul.mubr.f32.gmra.mrb[0].mxu0 %v363
      %v584 = vpop.f32.mrb[0].mxu0
      %v585 = vadd.f32 %v269, %v584
      %v586 = vpop.f32.mrb[0].mxu0
      %587 = vmatprep.mubr.f32.mxu0 0.0
      %588 = vmatmul.mubr.f32.gmra.mrb[0].mxu0 %v366
      %v589 = vpop.f32.mrb[0].mxu0
      %v590 = vadd.f32 %v269, %v589
      %v591 = vpop.f32.mrb[0].mxu0
      %592 = vdwg.mxu0
      %v593 = vmax.f32 %v435, 0.0
      %v594 = vmax.f32 %v440, 0.0
      %v595 = vmax.f32 %v445, 0.0
      %v596 = vmax.f32 %v450, 0.0
      %v597 = vmax.f32 %v455, 0.0
      %v598 = vmax.f32 %v460, 0.0
      %v599 = vmax.f32 %v465, 0.0
      %v600 = vmax.f32 %v470, 0.0
      %v601 = vmax.f32 %v475, 0.0
      %v602 = vmax.f32 %v480, 0.0
      %v603 = vmax.f32 %v485, 0.0
      %v604 = vmax.f32 %v490, 0.0
      %v605 = vmax.f32 %v495, 0.0
      %v606 = vmax.f32 %v500, 0.0
      %v607 = vmax.f32 %v505, 0.0
      %v608 = vmax.f32 %v510, 0.0
      %v609 = vmax.f32 %v515, 0.0
      %v610 = vmax.f32 %v520, 0.0
      %v611 = vmax.f32 %v525, 0.0
      %v612 = vmax.f32 %v530, 0.0
      %v613 = vmax.f32 %v535, 0.0
      %v614 = vmax.f32 %v540, 0.0
      %v615 = vmax.f32 %v545, 0.0
      %v616 = vmax.f32 %v550, 0.0
      %v617 = vmax.f32 %v555, 0.0
      %v618 = vmax.f32 %v560, 0.0
      %v619 = vmax.f32 %v565, 0.0
      %v620 = vmax.f32 %v570, 0.0
      %v621 = vmax.f32 %v575, 0.0
      %v622 = vmax.f32 %v580, 0.0
      %v623 = vmax.f32 %v585, 0.0
      %v624 = vmax.f32 %v590, 0.0
      %v625 = vld [vmem:[%s3] sm:$0xff]
      %v626 = vld [vmem:[%s3 + $0x8] sm:$0xff]
      %v627 = vld [vmem:[%s3 + $0x10] sm:$0xff]
      %v628 = vld [vmem:[%s3 + $0x18] sm:$0xff]
      %v629 = vld [vmem:[%s3 + $0x20] sm:$0xff]
      %v630 = vld [vmem:[%s3 + $0x28] sm:$0xff]
      %v631 = vld [vmem:[%s3 + $0x30] sm:$0xff]
      %v632 = vld [vmem:[%s3 + $0x38] sm:$0xff]
      %v633 = vld [vmem:[%s4] sm:$0x1]
      %v635 = vlaneseq
      %v636 = vshrl.u32 %v635, 7
      %v637 = vsub.s32 0, %v636
      %v638 = vrot.slane %v633, %v637
      %vm640 = vcmask 523264
      %v642 = vsel %vm640, %v593, 0
      %v645 = vsel %vm640, %v594, 0
      %v648 = vsel %vm640, %v595, 0
      %v651 = vsel %vm640, %v596, 0
      %v654 = vsel %vm640, %v597, 0
      %v657 = vsel %vm640, %v598, 0
      %v660 = vsel %vm640, %v599, 0
      %v663 = vsel %vm640, %v600, 0
      %v666 = vsel %vm640, %v601, 0
      %v669 = vsel %vm640, %v602, 0
      %v672 = vsel %vm640, %v603, 0
      %v675 = vsel %vm640, %v604, 0
      %v678 = vsel %vm640, %v605, 0
      %v681 = vsel %vm640, %v606, 0
      %v684 = vsel %vm640, %v607, 0
      %v687 = vsel %vm640, %v608, 0
      %v690 = vsel %vm640, %v609, 0
      %v693 = vsel %vm640, %v610, 0
      %v696 = vsel %vm640, %v611, 0
      %v699 = vsel %vm640, %v612, 0
      %v702 = vsel %vm640, %v613, 0
      %v705 = vsel %vm640, %v614, 0
      %v708 = vsel %vm640, %v615, 0
      %v711 = vsel %vm640, %v616, 0
      %v714 = vsel %vm640, %v617, 0
      %v717 = vsel %vm640, %v618, 0
      %v720 = vsel %vm640, %v619, 0
      %v723 = vsel %vm640, %v620, 0
      %v726 = vsel %vm640, %v621, 0
      %v729 = vsel %vm640, %v622, 0
      %v732 = vsel %vm640, %v623, 0
      %v735 = vsel %vm640, %v624, 0
      %737 = vmatprep.subr.mxu0 0.0
      %738 = vmatpush1.msra.mxu0 %v625
      %739 = vmatprep.subr.mxu0 0.0
      %740 = vmatpush1.msra.mxu0 %v626
      %741 = vmatprep.subr.mxu0 0.0
      %742 = vmatpush1.msra.mxu0 %v627
      %743 = vmatprep.subr.mxu0 0.0
      %744 = vmatpush1.msra.mxu0 %v628
      %745 = vmatprep.subr.mxu0 0.0
      %746 = vmatpush1.msra.mxu0 %v629
      %747 = vmatprep.subr.mxu0 0.0
      %748 = vmatpush1.msra.mxu0 %v630
      %749 = vmatprep.subr.mxu0 0.0
      %750 = vmatpush1.msra.mxu0 %v631
      %751 = vmatprep.subr.mxu0 0.0
      %752 = vmatpush1.msra.mxu0 %v632
      %753 = vmatprep.subr.mxu0 0.0
      %754 = vmatpush1.msra.mxu0 0.0
      %755 = vmatprep.subr.mxu0 0.0
      %756 = vmatpush1.msra.mxu0 0.0
      %757 = vmatprep.subr.mxu0 0.0
      %758 = vmatpush1.msra.mxu0 0.0
      %759 = vmatprep.subr.mxu0 0.0
      %760 = vmatpush1.msra.mxu0 0.0
      %761 = vmatprep.subr.mxu0 0.0
      %762 = vmatpush1.msra.mxu0 0.0
      %763 = vmatprep.subr.mxu0 0.0
      %764 = vmatpush1.msra.mxu0 0.0
      %765 = vmatprep.subr.mxu0 0.0
      %766 = vmatpush1.msra.mxu0 0.0
      %767 = vmatprep.subr.mxu0 0.0
      %768 = vmatpush1.msra.mxu0 0.0
      %769 = vmatprep.subr.mxu0 0.0
      %770 = vmatpush1.msra.mxu0 0.0
      %771 = vmatprep.subr.mxu0 0.0
      %772 = vmatpush1.msra.mxu0 0.0
      %773 = vmatprep.subr.mxu0 0.0
      %774 = vmatpush1.msra.mxu0 0.0
      %775 = vmatprep.subr.mxu0 0.0
      %776 = vmatpush1.msra.mxu0 0.0
      %777 = vmatprep.subr.mxu0 0.0
      %778 = vmatpush1.msra.mxu0 0.0
      %779 = vmatprep.subr.mxu0 0.0
      %780 = vmatpush1.msra.mxu0 0.0
      %781 = vmatprep.subr.mxu0 0.0
      %782 = vmatpush1.msra.mxu0 0.0
      %783 = vmatprep.subr.mxu0 0.0
      %784 = vmatpush1.msra.mxu0 0.0
      %785 = vmatprep.subr.mxu0 0.0
      %786 = vmatpush1.msra.mxu0 0.0
      %787 = vmatprep.subr.mxu0 0.0
      %788 = vmatpush1.msra.mxu0 0.0
      %789 = vmatprep.subr.mxu0 0.0
      %790 = vmatpush1.msra.mxu0 0.0
      %791 = vmatprep.subr.mxu0 0.0
      %792 = vmatpush1.msra.mxu0 0.0
      %793 = vmatprep.subr.mxu0 0.0
      %794 = vmatpush1.msra.mxu0 0.0
      %795 = vmatprep.subr.mxu0 0.0
      %796 = vmatpush1.msra.mxu0 0.0
      %797 = vmatprep.subr.mxu0 0.0
      %798 = vmatpush1.msra.mxu0 0.0
      %799 = vmatprep.subr.mxu0 0.0
      %800 = vmatpush1.msra.mxu0 0.0
      %801 = vmatprep.mubr.f32.mxu0 0.0
      %802 = vmatmul.mubr.f32.gmra.mrb[0].mxu0 %v642
      %v803 = vpop.f32.mrb[0].mxu0
      %v804 = vadd.f32 %v638, %v803
      %v805 = vpop.f32.mrb[0].mxu0
      %806 = vmatprep.mubr.f32.mxu0 0.0
      %807 = vmatmul.mubr.f32.gmra.mrb[0].mxu0 %v645
      %v808 = vpop.f32.mrb[0].mxu0
      %v809 = vadd.f32 %v638, %v808
      %v810 = vpop.f32.mrb[0].mxu0
      %811 = vmatprep.mubr.f32.mxu0 0.0
      %812 = vmatmul.mubr.f32.gmra.mrb[0].mxu0 %v648
      %v813 = vpop.f32.mrb[0].mxu0
      %v814 = vadd.f32 %v638, %v813
      %v815 = vpop.f32.mrb[0].mxu0
      %816 = vmatprep.mubr.f32.mxu0 0.0
      %817 = vmatmul.mubr.f32.gmra.mrb[0].mxu0 %v651
      %v818 = vpop.f32.mrb[0].mxu0
      %v819 = vadd.f32 %v638, %v818
      %v820 = vpop.f32.mrb[0].mxu0
      %821 = vmatprep.mubr.f32.mxu0 0.0
      %822 = vmatmul.mubr.f32.gmra.mrb[0].mxu0 %v654
      %v823 = vpop.f32.mrb[0].mxu0
      %v824 = vadd.f32 %v638, %v823
      %v825 = vpop.f32.mrb[0].mxu0
      %826 = vmatprep.mubr.f32.mxu0 0.0
      %827 = vmatmul.mubr.f32.gmra.mrb[0].mxu0 %v657
      %v828 = vpop.f32.mrb[0].mxu0
      %v829 = vadd.f32 %v638, %v828
      %v830 = vpop.f32.mrb[0].mxu0
      %831 = vmatprep.mubr.f32.mxu0 0.0
      %832 = vmatmul.mubr.f32.gmra.mrb[0].mxu0 %v660
      %v833 = vpop.f32.mrb[0].mxu0
      %v834 = vadd.f32 %v638, %v833
      %v835 = vpop.f32.mrb[0].mxu0
      %836 = vmatprep.mubr.f32.mxu0 0.0
      %837 = vmatmul.mubr.f32.gmra.mrb[0].mxu0 %v663
      %v838 = vpop.f32.mrb[0].mxu0
      %v839 = vadd.f32 %v638, %v838
      %v840 = vpop.f32.mrb[0].mxu0
      %841 = vmatprep.mubr.f32.mxu0 0.0
      %842 = vmatmul.mubr.f32.gmra.mrb[0].mxu0 %v666
      %v843 = vpop.f32.mrb[0].mxu0
      %v844 = vadd.f32 %v638, %v843
      %v845 = vpop.f32.mrb[0].mxu0
      %846 = vmatprep.mubr.f32.mxu0 0.0
      %847 = vmatmul.mubr.f32.gmra.mrb[0].mxu0 %v669
      %v848 = vpop.f32.mrb[0].mxu0
      %v849 = vadd.f32 %v638, %v848
      %v850 = vpop.f32.mrb[0].mxu0
      %851 = vmatprep.mubr.f32.mxu0 0.0
      %852 = vmatmul.mubr.f32.gmra.mrb[0].mxu0 %v672
      %v853 = vpop.f32.mrb[0].mxu0
      %v854 = vadd.f32 %v638, %v853
      %v855 = vpop.f32.mrb[0].mxu0
      %856 = vmatprep.mubr.f32.mxu0 0.0
      %857 = vmatmul.mubr.f32.gmra.mrb[0].mxu0 %v675
      %v858 = vpop.f32.mrb[0].mxu0
      %v859 = vadd.f32 %v638, %v858
      %v860 = vpop.f32.mrb[0].mxu0
      %861 = vmatprep.mubr.f32.mxu0 0.0
      %862 = vmatmul.mubr.f32.gmra.mrb[0].mxu0 %v678
      %v863 = vpop.f32.mrb[0].mxu0
      %v864 = vadd.f32 %v638, %v863
      %v865 = vpop.f32.mrb[0].mxu0
      %866 = vmatprep.mubr.f32.mxu0 0.0
      %867 = vmatmul.mubr.f32.gmra.mrb[0].mxu0 %v681
      %v868 = vpop.f32.mrb[0].mxu0
      %v869 = vadd.f32 %v638, %v868
      %v870 = vpop.f32.mrb[0].mxu0
      %871 = vmatprep.mubr.f32.mxu0 0.0
      %872 = vmatmul.mubr.f32.gmra.mrb[0].mxu0 %v684
      %v873 = vpop.f32.mrb[0].mxu0
      %v874 = vadd.f32 %v638, %v873
      %v875 = vpop.f32.mrb[0].mxu0
      %876 = vmatprep.mubr.f32.mxu0 0.0
      %877 = vmatmul.mubr.f32.gmra.mrb[0].mxu0 %v687
      %v878 = vpop.f32.mrb[0].mxu0
      %v879 = vadd.f32 %v638, %v878
      %v880 = vpop.f32.mrb[0].mxu0
      %881 = vmatprep.mubr.f32.mxu0 0.0
      %882 = vmatmul.mubr.f32.gmra.mrb[0].mxu0 %v690
      %v883 = vpop.f32.mrb[0].mxu0
      %v884 = vadd.f32 %v638, %v883
      %v885 = vpop.f32.mrb[0].mxu0
      %886 = vmatprep.mubr.f32.mxu0 0.0
      %887 = vmatmul.mubr.f32.gmra.mrb[0].mxu0 %v693
      %v888 = vpop.f32.mrb[0].mxu0
      %v889 = vadd.f32 %v638, %v888
      %v890 = vpop.f32.mrb[0].mxu0
      %891 = vmatprep.mubr.f32.mxu0 0.0
      %892 = vmatmul.mubr.f32.gmra.mrb[0].mxu0 %v696
      %v893 = vpop.f32.mrb[0].mxu0
      %v894 = vadd.f32 %v638, %v893
      %v895 = vpop.f32.mrb[0].mxu0
      %896 = vmatprep.mubr.f32.mxu0 0.0
      %897 = vmatmul.mubr.f32.gmra.mrb[0].mxu0 %v699
      %v898 = vpop.f32.mrb[0].mxu0
      %v899 = vadd.f32 %v638, %v898
      %v900 = vpop.f32.mrb[0].mxu0
      %901 = vmatprep.mubr.f32.mxu0 0.0
      %902 = vmatmul.mubr.f32.gmra.mrb[0].mxu0 %v702
      %v903 = vpop.f32.mrb[0].mxu0
      %v904 = vadd.f32 %v638, %v903
      %v905 = vpop.f32.mrb[0].mxu0
      %906 = vmatprep.mubr.f32.mxu0 0.0
      %907 = vmatmul.mubr.f32.gmra.mrb[0].mxu0 %v705
      %v908 = vpop.f32.mrb[0].mxu0
      %v909 = vadd.f32 %v638, %v908
      %v910 = vpop.f32.mrb[0].mxu0
      %911 = vmatprep.mubr.f32.mxu0 0.0
      %912 = vmatmul.mubr.f32.gmra.mrb[0].mxu0 %v708
      %v913 = vpop.f32.mrb[0].mxu0
      %v914 = vadd.f32 %v638, %v913
      %v915 = vpop.f32.mrb[0].mxu0
      %916 = vmatprep.mubr.f32.mxu0 0.0
      %917 = vmatmul.mubr.f32.gmra.mrb[0].mxu0 %v711
      %v918 = vpop.f32.mrb[0].mxu0
      %v919 = vadd.f32 %v638, %v918
      %v920 = vpop.f32.mrb[0].mxu0
      %921 = vmatprep.mubr.f32.mxu0 0.0
      %922 = vmatmul.mubr.f32.gmra.mrb[0].mxu0 %v714
      %v923 = vpop.f32.mrb[0].mxu0
      %v924 = vadd.f32 %v638, %v923
      %v925 = vpop.f32.mrb[0].mxu0
      %926 = vmatprep.mubr.f32.mxu0 0.0
      %927 = vmatmul.mubr.f32.gmra.mrb[0].mxu0 %v717
      %v928 = vpop.f32.mrb[0].mxu0
      %v929 = vadd.f32 %v638, %v928
      %v930 = vpop.f32.mrb[0].mxu0
      %931 = vmatprep.mubr.f32.mxu0 0.0
      %932 = vmatmul.mubr.f32.gmra.mrb[0].mxu0 %v720
      %v933 = vpop.f32.mrb[0].mxu0
      %v934 = vadd.f32 %v638, %v933
      %v935 = vpop.f32.mrb[0].mxu0
      %936 = vmatprep.mubr.f32.mxu0 0.0
      %937 = vmatmul.mubr.f32.gmra.mrb[0].mxu0 %v723
      %v938 = vpop.f32.mrb[0].mxu0
      %v939 = vadd.f32 %v638, %v938
      %v940 = vpop.f32.mrb[0].mxu0
      %941 = vmatprep.mubr.f32.mxu0 0.0
      %942 = vmatmul.mubr.f32.gmra.mrb[0].mxu0 %v726
      %v943 = vpop.f32.mrb[0].mxu0
      %v944 = vadd.f32 %v638, %v943
      %v945 = vpop.f32.mrb[0].mxu0
      %946 = vmatprep.mubr.f32.mxu0 0.0
      %947 = vmatmul.mubr.f32.gmra.mrb[0].mxu0 %v729
      %v948 = vpop.f32.mrb[0].mxu0
      %v949 = vadd.f32 %v638, %v948
      %v950 = vpop.f32.mrb[0].mxu0
      %951 = vmatprep.mubr.f32.mxu0 0.0
      %952 = vmatmul.mubr.f32.gmra.mrb[0].mxu0 %v732
      %v953 = vpop.f32.mrb[0].mxu0
      %v954 = vadd.f32 %v638, %v953
      %v955 = vpop.f32.mrb[0].mxu0
      %956 = vmatprep.mubr.f32.mxu0 0.0
      %957 = vmatmul.mubr.f32.gmra.mrb[0].mxu0 %v735
      %v958 = vpop.f32.mrb[0].mxu0
      %v959 = vadd.f32 %v638, %v958
      %v960 = vpop.f32.mrb[0].mxu0
      %961 = vdwg.mxu0
      %vm962 = vcmask 130048
      %v963 = vsel %vm962, %v804, -inf
      %964 = vmax.xlane.f32.xlu0 %v963
      %v965 = vpop.xlane.xlu0 %964
      %v966 = vsel %vm962, %v809, -inf
      %967 = vmax.xlane.f32.xlu0 %v966
      %v968 = vpop.xlane.xlu0 %967
      %v969 = vsel %vm962, %v814, -inf
      %970 = vmax.xlane.f32.xlu0 %v969
      %v971 = vpop.xlane.xlu0 %970
      %v972 = vsel %vm962, %v819, -inf
      %973 = vmax.xlane.f32.xlu0 %v972
      %v974 = vpop.xlane.xlu0 %973
      %v975 = vsel %vm962, %v824, -inf
      %976 = vmax.xlane.f32.xlu0 %v975
      %v977 = vpop.xlane.xlu0 %976
      %v978 = vsel %vm962, %v829, -inf
      %979 = vmax.xlane.f32.xlu0 %v978
      %v980 = vpop.xlane.xlu0 %979
      %v981 = vsel %vm962, %v834, -inf
      %982 = vmax.xlane.f32.xlu0 %v981
      %v983 = vpop.xlane.xlu0 %982
      %v984 = vsel %vm962, %v839, -inf
      %985 = vmax.xlane.f32.xlu0 %v984
      %v986 = vpop.xlane.xlu0 %985
      %v987 = vsel %vm962, %v844, -inf
      %988 = vmax.xlane.f32.xlu0 %v987
      %v989 = vpop.xlane.xlu0 %988
      %v990 = vsel %vm962, %v849, -inf
      %991 = vmax.xlane.f32.xlu0 %v990
      %v992 = vpop.xlane.xlu0 %991
      %v993 = vsel %vm962, %v854, -inf
      %994 = vmax.xlane.f32.xlu0 %v993
      %v995 = vpop.xlane.xlu0 %994
      %v996 = vsel %vm962, %v859, -inf
      %997 = vmax.xlane.f32.xlu0 %v996
      %v998 = vpop.xlane.xlu0 %997
      %v999 = vsel %vm962, %v864, -inf
      %1000 = vmax.xlane.f32.xlu0 %v999
      %v1001 = vpop.xlane.xlu0 %1000
      %v1002 = vsel %vm962, %v869, -inf
      %1003 = vmax.xlane.f32.xlu0 %v1002
      %v1004 = vpop.xlane.xlu0 %1003
      %v1005 = vsel %vm962, %v874, -inf
      %1006 = vmax.xlane.f32.xlu0 %v1005
      %v1007 = vpop.xlane.xlu0 %1006
      %v1008 = vsel %vm962, %v879, -inf
      %1009 = vmax.xlane.f32.xlu0 %v1008
      %v1010 = vpop.xlane.xlu0 %1009
      %v1011 = vsel %vm962, %v884, -inf
      %1012 = vmax.xlane.f32.xlu0 %v1011
      %v1013 = vpop.xlane.xlu0 %1012
      %v1014 = vsel %vm962, %v889, -inf
      %1015 = vmax.xlane.f32.xlu0 %v1014
      %v1016 = vpop.xlane.xlu0 %1015
      %v1017 = vsel %vm962, %v894, -inf
      %1018 = vmax.xlane.f32.xlu0 %v1017
      %v1019 = vpop.xlane.xlu0 %1018
      %v1020 = vsel %vm962, %v899, -inf
      %1021 = vmax.xlane.f32.xlu0 %v1020
      %v1022 = vpop.xlane.xlu0 %1021
      %v1023 = vsel %vm962, %v904, -inf
      %1024 = vmax.xlane.f32.xlu0 %v1023
      %v1025 = vpop.xlane.xlu0 %1024
      %v1026 = vsel %vm962, %v909, -inf
      %1027 = vmax.xlane.f32.xlu0 %v1026
      %v1028 = vpop.xlane.xlu0 %1027
      %v1029 = vsel %vm962, %v914, -inf
      %1030 = vmax.xlane.f32.xlu0 %v1029
      %v1031 = vpop.xlane.xlu0 %1030
      %v1032 = vsel %vm962, %v919, -inf
      %1033 = vmax.xlane.f32.xlu0 %v1032
      %v1034 = vpop.xlane.xlu0 %1033
      %v1035 = vsel %vm962, %v924, -inf
      %1036 = vmax.xlane.f32.xlu0 %v1035
      %v1037 = vpop.xlane.xlu0 %1036
      %v1038 = vsel %vm962, %v929, -inf
      %1039 = vmax.xlane.f32.xlu0 %v1038
      %v1040 = vpop.xlane.xlu0 %1039
      %v1041 = vsel %vm962, %v934, -inf
      %1042 = vmax.xlane.f32.xlu0 %v1041
      %v1043 = vpop.xlane.xlu0 %1042
      %v1044 = vsel %vm962, %v939, -inf
      %1045 = vmax.xlane.f32.xlu0 %v1044
      %v1046 = vpop.xlane.xlu0 %1045
      %v1047 = vsel %vm962, %v944, -inf
      %1048 = vmax.xlane.f32.xlu0 %v1047
      %v1049 = vpop.xlane.xlu0 %1048
      %v1050 = vsel %vm962, %v949, -inf
      %1051 = vmax.xlane.f32.xlu0 %v1050
      %v1052 = vpop.xlane.xlu0 %1051
      %v1053 = vsel %vm962, %v954, -inf
      %1054 = vmax.xlane.f32.xlu0 %v1053
      %v1055 = vpop.xlane.xlu0 %1054
      %v1056 = vsel %vm962, %v959, -inf
      %1057 = vmax.xlane.f32.xlu0 %v1056
      %v1058 = vpop.xlane.xlu0 %1057
      %v1059 = vsub.f32 %v804, %v965
      %v1060 = vsub.f32 %v809, %v968
      %v1061 = vsub.f32 %v814, %v971
      %v1062 = vsub.f32 %v819, %v974
      %v1063 = vsub.f32 %v824, %v977
      %v1064 = vsub.f32 %v829, %v980
      %v1065 = vsub.f32 %v834, %v983
      %v1066 = vsub.f32 %v839, %v986
      %v1067 = vsub.f32 %v844, %v989
      %v1068 = vsub.f32 %v849, %v992
      %v1069 = vsub.f32 %v854, %v995
      %v1070 = vsub.f32 %v859, %v998
      %v1071 = vsub.f32 %v864, %v1001
      %v1072 = vsub.f32 %v869, %v1004
      %v1073 = vsub.f32 %v874, %v1007
      %v1074 = vsub.f32 %v879, %v1010
      %v1075 = vsub.f32 %v884, %v1013
      %v1076 = vsub.f32 %v889, %v1016
      %v1077 = vsub.f32 %v894, %v1019
      %v1078 = vsub.f32 %v899, %v1022
      %v1079 = vsub.f32 %v904, %v1025
      %v1080 = vsub.f32 %v909, %v1028
      %v1081 = vsub.f32 %v914, %v1031
      %v1082 = vsub.f32 %v919, %v1034
      %v1083 = vsub.f32 %v924, %v1037
      %v1084 = vsub.f32 %v929, %v1040
      %v1085 = vsub.f32 %v934, %v1043
      %v1086 = vsub.f32 %v939, %v1046
      %v1087 = vsub.f32 %v944, %v1049
      %v1088 = vsub.f32 %v949, %v1052
      %v1089 = vsub.f32 %v954, %v1055
      %v1090 = vsub.f32 %v959, %v1058
      %v1091 = vmul.f32 %v1059, 1.442695
      %v1092 = vpow.pop %v1091
      %v1093 = vmul.f32 %v1060, 1.442695
      %v1094 = vpow.pop %v1093
      %v1095 = vmul.f32 %v1061, 1.442695
      %v1096 = vpow.pop %v1095
      %v1097 = vmul.f32 %v1062, 1.442695
      %v1098 = vpow.pop %v1097
      %v1099 = vmul.f32 %v1063, 1.442695
      %v1100 = vpow.pop %v1099
      %v1101 = vmul.f32 %v1064, 1.442695
      %v1102 = vpow.pop %v1101
      %v1103 = vmul.f32 %v1065, 1.442695
      %v1104 = vpow.pop %v1103
      %v1105 = vmul.f32 %v1066, 1.442695
      %v1106 = vpow.pop %v1105
      %v1107 = vmul.f32 %v1067, 1.442695
      %v1108 = vpow.pop %v1107
      %v1109 = vmul.f32 %v1068, 1.442695
      %v1110 = vpow.pop %v1109
      %v1111 = vmul.f32 %v1069, 1.442695
      %v1112 = vpow.pop %v1111
      %v1113 = vmul.f32 %v1070, 1.442695
      %v1114 = vpow.pop %v1113
      %v1115 = vmul.f32 %v1071, 1.442695
      %v1116 = vpow.pop %v1115
      %v1117 = vmul.f32 %v1072, 1.442695
      %v1118 = vpow.pop %v1117
      %v1119 = vmul.f32 %v1073, 1.442695
      %v1120 = vpow.pop %v1119
      %v1121 = vmul.f32 %v1074, 1.442695
      %v1122 = vpow.pop %v1121
      %v1123 = vmul.f32 %v1075, 1.442695
      %v1124 = vpow.pop %v1123
      %v1125 = vmul.f32 %v1076, 1.442695
      %v1126 = vpow.pop %v1125
      %v1127 = vmul.f32 %v1077, 1.442695
      %v1128 = vpow.pop %v1127
      %v1129 = vmul.f32 %v1078, 1.442695
      %v1130 = vpow.pop %v1129
      %v1131 = vmul.f32 %v1079, 1.442695
      %v1132 = vpow.pop %v1131
      %v1133 = vmul.f32 %v1080, 1.442695
      %v1134 = vpow.pop %v1133
      %v1135 = vmul.f32 %v1081, 1.442695
      %v1136 = vpow.pop %v1135
      %v1137 = vmul.f32 %v1082, 1.442695
      %v1138 = vpow.pop %v1137
      %v1139 = vmul.f32 %v1083, 1.442695
      %v1140 = vpow.pop %v1139
      %v1141 = vmul.f32 %v1084, 1.442695
      %v1142 = vpow.pop %v1141
      %v1143 = vmul.f32 %v1085, 1.442695
      %v1144 = vpow.pop %v1143
      %v1145 = vmul.f32 %v1086, 1.442695
      %v1146 = vpow.pop %v1145
      %v1147 = vmul.f32 %v1087, 1.442695
      %v1148 = vpow.pop %v1147
      %v1149 = vmul.f32 %v1088, 1.442695
      %v1150 = vpow.pop %v1149
      %v1151 = vmul.f32 %v1089, 1.442695
      %v1152 = vpow.pop %v1151
      %v1153 = vmul.f32 %v1090, 1.442695
      %v1154 = vpow.pop %v1153
      %v1155 = vsel %vm962, %v1092, 0.0
      %1156 = vadd.xlane.f32.xlu0 %v1155
      %v1157 = vpop.xlane.xlu0 %1156
      %v1158 = vsel %vm962, %v1094, 0.0
      %1159 = vadd.xlane.f32.xlu0 %v1158
      %v1160 = vpop.xlane.xlu0 %1159
      %v1161 = vsel %vm962, %v1096, 0.0
      %1162 = vadd.xlane.f32.xlu0 %v1161
      %v1163 = vpop.xlane.xlu0 %1162
      %v1164 = vsel %vm962, %v1098, 0.0
      %1165 = vadd.xlane.f32.xlu0 %v1164
      %v1166 = vpop.xlane.xlu0 %1165
      %v1167 = vsel %vm962, %v1100, 0.0
      %1168 = vadd.xlane.f32.xlu0 %v1167
      %v1169 = vpop.xlane.xlu0 %1168
      %v1170 = vsel %vm962, %v1102, 0.0
      %1171 = vadd.xlane.f32.xlu0 %v1170
      %v1172 = vpop.xlane.xlu0 %1171
      %v1173 = vsel %vm962, %v1104, 0.0
      %1174 = vadd.xlane.f32.xlu0 %v1173
      %v1175 = vpop.xlane.xlu0 %1174
      %v1176 = vsel %vm962, %v1106, 0.0
      %1177 = vadd.xlane.f32.xlu0 %v1176
      %v1178 = vpop.xlane.xlu0 %1177
      %v1179 = vsel %vm962, %v1108, 0.0
      %1180 = vadd.xlane.f32.xlu0 %v1179
      %v1181 = vpop.xlane.xlu0 %1180
      %v1182 = vsel %vm962, %v1110, 0.0
      %1183 = vadd.xlane.f32.xlu0 %v1182
      %v1184 = vpop.xlane.xlu0 %1183
      %v1185 = vsel %vm962, %v1112, 0.0
      %1186 = vadd.xlane.f32.xlu0 %v1185
      %v1187 = vpop.xlane.xlu0 %1186
      %v1188 = vsel %vm962, %v1114, 0.0
      %1189 = vadd.xlane.f32.xlu0 %v1188
      %v1190 = vpop.xlane.xlu0 %1189
      %v1191 = vsel %vm962, %v1116, 0.0
      %1192 = vadd.xlane.f32.xlu0 %v1191
      %v1193 = vpop.xlane.xlu0 %1192
      %v1194 = vsel %vm962, %v1118, 0.0
      %1195 = vadd.xlane.f32.xlu0 %v1194
      %v1196 = vpop.xlane.xlu0 %1195
      %v1197 = vsel %vm962, %v1120, 0.0
      %1198 = vadd.xlane.f32.xlu0 %v1197
      %v1199 = vpop.xlane.xlu0 %1198
      %v1200 = vsel %vm962, %v1122, 0.0
      %1201 = vadd.xlane.f32.xlu0 %v1200
      %v1202 = vpop.xlane.xlu0 %1201
      %v1203 = vsel %vm962, %v1124, 0.0
      %1204 = vadd.xlane.f32.xlu0 %v1203
      %v1205 = vpop.xlane.xlu0 %1204
      %v1206 = vsel %vm962, %v1126, 0.0
      %1207 = vadd.xlane.f32.xlu0 %v1206
      %v1208 = vpop.xlane.xlu0 %1207
      %v1209 = vsel %vm962, %v1128, 0.0
      %1210 = vadd.xlane.f32.xlu0 %v1209
      %v1211 = vpop.xlane.xlu0 %1210
      %v1212 = vsel %vm962, %v1130, 0.0
      %1213 = vadd.xlane.f32.xlu0 %v1212
      %v1214 = vpop.xlane.xlu0 %1213
      %v1215 = vsel %vm962, %v1132, 0.0
      %1216 = vadd.xlane.f32.xlu0 %v1215
      %v1217 = vpop.xlane.xlu0 %1216
      %v1218 = vsel %vm962, %v1134, 0.0
      %1219 = vadd.xlane.f32.xlu0 %v1218
      %v1220 = vpop.xlane.xlu0 %1219
      %v1221 = vsel %vm962, %v1136, 0.0
      %1222 = vadd.xlane.f32.xlu0 %v1221
      %v1223 = vpop.xlane.xlu0 %1222
      %v1224 = vsel %vm962, %v1138, 0.0
      %1225 = vadd.xlane.f32.xlu0 %v1224
      %v1226 = vpop.xlane.xlu0 %1225
      %v1227 = vsel %vm962, %v1140, 0.0
      %1228 = vadd.xlane.f32.xlu0 %v1227
      %v1229 = vpop.xlane.xlu0 %1228
      %v1230 = vsel %vm962, %v1142, 0.0
      %1231 = vadd.xlane.f32.xlu0 %v1230
      %v1232 = vpop.xlane.xlu0 %1231
      %v1233 = vsel %vm962, %v1144, 0.0
      %1234 = vadd.xlane.f32.xlu0 %v1233
      %v1235 = vpop.xlane.xlu0 %1234
      %v1236 = vsel %vm962, %v1146, 0.0
      %1237 = vadd.xlane.f32.xlu0 %v1236
      %v1238 = vpop.xlane.xlu0 %1237
      %v1239 = vsel %vm962, %v1148, 0.0
      %1240 = vadd.xlane.f32.xlu0 %v1239
      %v1241 = vpop.xlane.xlu0 %1240
      %v1242 = vsel %vm962, %v1150, 0.0
      %1243 = vadd.xlane.f32.xlu0 %v1242
      %v1244 = vpop.xlane.xlu0 %1243
      %v1245 = vsel %vm962, %v1152, 0.0
      %1246 = vadd.xlane.f32.xlu0 %v1245
      %v1247 = vpop.xlane.xlu0 %1246
      %v1248 = vsel %vm962, %v1154, 0.0
      %1249 = vadd.xlane.f32.xlu0 %v1248
      %v1250 = vpop.xlane.xlu0 %1249
      %v1251 = vlog2.pop %v1157
      %v1252 = vmul.f32 %v1251, 0.6931472
      %v1253 = vlog2.pop %v1160
      %v1254 = vmul.f32 %v1253, 0.6931472
      %v1255 = vlog2.pop %v1163
      %v1256 = vmul.f32 %v1255, 0.6931472
      %v1257 = vlog2.pop %v1166
      %v1258 = vmul.f32 %v1257, 0.6931472
      %v1259 = vlog2.pop %v1169
      %v1260 = vmul.f32 %v1259, 0.6931472
      %v1261 = vlog2.pop %v1172
      %v1262 = vmul.f32 %v1261, 0.6931472
      %v1263 = vlog2.pop %v1175
      %v1264 = vmul.f32 %v1263, 0.6931472
      %v1265 = vlog2.pop %v1178
      %v1266 = vmul.f32 %v1265, 0.6931472
      %v1267 = vlog2.pop %v1181
      %v1268 = vmul.f32 %v1267, 0.6931472
      %v1269 = vlog2.pop %v1184
      %v1270 = vmul.f32 %v1269, 0.6931472
      %v1271 = vlog2.pop %v1187
      %v1272 = vmul.f32 %v1271, 0.6931472
      %v1273 = vlog2.pop %v1190
      %v1274 = vmul.f32 %v1273, 0.6931472
      %v1275 = vlog2.pop %v1193
      %v1276 = vmul.f32 %v1275, 0.6931472
      %v1277 = vlog2.pop %v1196
      %v1278 = vmul.f32 %v1277, 0.6931472
      %v1279 = vlog2.pop %v1199
      %v1280 = vmul.f32 %v1279, 0.6931472
      %v1281 = vlog2.pop %v1202
      %v1282 = vmul.f32 %v1281, 0.6931472
      %v1283 = vlog2.pop %v1205
      %v1284 = vmul.f32 %v1283, 0.6931472
      %v1285 = vlog2.pop %v1208
      %v1286 = vmul.f32 %v1285, 0.6931472
      %v1287 = vlog2.pop %v1211
      %v1288 = vmul.f32 %v1287, 0.6931472
      %v1289 = vlog2.pop %v1214
      %v1290 = vmul.f32 %v1289, 0.6931472
      %v1291 = vlog2.pop %v1217
      %v1292 = vmul.f32 %v1291, 0.6931472
      %v1293 = vlog2.pop %v1220
      %v1294 = vmul.f32 %v1293, 0.6931472
      %v1295 = vlog2.pop %v1223
      %v1296 = vmul.f32 %v1295, 0.6931472
      %v1297 = vlog2.pop %v1226
      %v1298 = vmul.f32 %v1297, 0.6931472
      %v1299 = vlog2.pop %v1229
      %v1300 = vmul.f32 %v1299, 0.6931472
      %v1301 = vlog2.pop %v1232
      %v1302 = vmul.f32 %v1301, 0.6931472
      %v1303 = vlog2.pop %v1235
      %v1304 = vmul.f32 %v1303, 0.6931472
      %v1305 = vlog2.pop %v1238
      %v1306 = vmul.f32 %v1305, 0.6931472
      %v1307 = vlog2.pop %v1241
      %v1308 = vmul.f32 %v1307, 0.6931472
      %v1309 = vlog2.pop %v1244
      %v1310 = vmul.f32 %v1309, 0.6931472
      %v1311 = vlog2.pop %v1247
      %v1312 = vmul.f32 %v1311, 0.6931472
      %v1313 = vlog2.pop %v1250
      %v1314 = vmul.f32 %v1313, 0.6931472
      %v1315 = vsub.f32 %v1059, %v1252
      %v1316 = vsub.f32 %v1060, %v1254
      %v1317 = vsub.f32 %v1061, %v1256
      %v1318 = vsub.f32 %v1062, %v1258
      %v1319 = vsub.f32 %v1063, %v1260
      %v1320 = vsub.f32 %v1064, %v1262
      %v1321 = vsub.f32 %v1065, %v1264
      %v1322 = vsub.f32 %v1066, %v1266
      %v1323 = vsub.f32 %v1067, %v1268
      %v1324 = vsub.f32 %v1068, %v1270
      %v1325 = vsub.f32 %v1069, %v1272
      %v1326 = vsub.f32 %v1070, %v1274
      %v1327 = vsub.f32 %v1071, %v1276
      %v1328 = vsub.f32 %v1072, %v1278
      %v1329 = vsub.f32 %v1073, %v1280
      %v1330 = vsub.f32 %v1074, %v1282
      %v1331 = vsub.f32 %v1075, %v1284
      %v1332 = vsub.f32 %v1076, %v1286
      %v1333 = vsub.f32 %v1077, %v1288
      %v1334 = vsub.f32 %v1078, %v1290
      %v1335 = vsub.f32 %v1079, %v1292
      %v1336 = vsub.f32 %v1080, %v1294
      %v1337 = vsub.f32 %v1081, %v1296
      %v1338 = vsub.f32 %v1082, %v1298
      %v1339 = vsub.f32 %v1083, %v1300
      %v1340 = vsub.f32 %v1084, %v1302
      %v1341 = vsub.f32 %v1085, %v1304
      %v1342 = vsub.f32 %v1086, %v1306
      %v1343 = vsub.f32 %v1087, %v1308
      %v1344 = vsub.f32 %v1088, %v1310
      %v1345 = vsub.f32 %v1089, %v1312
      %v1346 = vsub.f32 %v1090, %v1314
      %1347 = vst.msk [vmem:[%s226] sm:$0xff] %vm962, %v1315
      %1348 = vst.msk [vmem:[%s226 + $0x8] sm:$0xff] %vm962, %v1316
      %1349 = vst.msk [vmem:[%s226 + $0x10] sm:$0xff] %vm962, %v1317
      %1350 = vst.msk [vmem:[%s226 + $0x18] sm:$0xff] %vm962, %v1318
      %1351 = vst.msk [vmem:[%s226 + $0x20] sm:$0xff] %vm962, %v1319
      %1352 = vst.msk [vmem:[%s226 + $0x28] sm:$0xff] %vm962, %v1320
      %1353 = vst.msk [vmem:[%s226 + $0x30] sm:$0xff] %vm962, %v1321
      %1354 = vst.msk [vmem:[%s226 + $0x38] sm:$0xff] %vm962, %v1322
      %1355 = vst.msk [vmem:[%s226 + $0x40] sm:$0xff] %vm962, %v1323
      %1356 = vst.msk [vmem:[%s226 + $0x48] sm:$0xff] %vm962, %v1324
      %1357 = vst.msk [vmem:[%s226 + $0x50] sm:$0xff] %vm962, %v1325
      %1358 = vst.msk [vmem:[%s226 + $0x58] sm:$0xff] %vm962, %v1326
      %1359 = vst.msk [vmem:[%s226 + $0x60] sm:$0xff] %vm962, %v1327
      %1360 = vst.msk [vmem:[%s226 + $0x68] sm:$0xff] %vm962, %v1328
      %1361 = vst.msk [vmem:[%s226 + $0x70] sm:$0xff] %vm962, %v1329
      %1362 = vst.msk [vmem:[%s226 + $0x78] sm:$0xff] %vm962, %v1330
      %1363 = vst.msk [vmem:[%s226 + $0x80] sm:$0xff] %vm962, %v1331
      %1364 = vst.msk [vmem:[%s226 + $0x88] sm:$0xff] %vm962, %v1332
      %1365 = vst.msk [vmem:[%s226 + $0x90] sm:$0xff] %vm962, %v1333
      %1366 = vst.msk [vmem:[%s226 + $0x98] sm:$0xff] %vm962, %v1334
      %1367 = vst.msk [vmem:[%s226 + $0xa0] sm:$0xff] %vm962, %v1335
      %1368 = vst.msk [vmem:[%s226 + $0xa8] sm:$0xff] %vm962, %v1336
      %1369 = vst.msk [vmem:[%s226 + $0xb0] sm:$0xff] %vm962, %v1337
      %1370 = vst.msk [vmem:[%s226 + $0xb8] sm:$0xff] %vm962, %v1338
      %1371 = vst.msk [vmem:[%s226 + $0xc0] sm:$0xff] %vm962, %v1339
      %1372 = vst.msk [vmem:[%s226 + $0xc8] sm:$0xff] %vm962, %v1340
      %1373 = vst.msk [vmem:[%s226 + $0xd0] sm:$0xff] %vm962, %v1341
      %1374 = vst.msk [vmem:[%s226 + $0xd8] sm:$0xff] %vm962, %v1342
      %1375 = vst.msk [vmem:[%s226 + $0xe0] sm:$0xff] %vm962, %v1343
      %1376 = vst.msk [vmem:[%s226 + $0xe8] sm:$0xff] %vm962, %v1344
      %1377 = vst.msk [vmem:[%s226 + $0xf0] sm:$0xff] %vm962, %v1345
      %1378 = vst.msk [vmem:[%s226 + $0xf8] sm:$0xff] %vm962, %v1346
      %s1379 = smul.u32 32, %s16
      %p1380 = scmp.lt.s32.totalorder %s1379, 63
      %s1381 = scalar_select %p1380, %s1379, 63
      %s1382 = smul.addr %s1381, 8
      %s1383 = scalar_lea.vmem %s5, %s1382
      // Predicated region
      $region41: #{network_forward.1} parent=39 // pred_check
        %p1384 = pneg %p144
      $region42: #{network_forward.1} parent=39 // pred_check_branch
        %1386 = sbr.rel (%p1384) target = $region44
      $region43: #{network_forward.1} parent=39 // pred_region
        %s1387 = smul.u32 32, %s16
      $region44: #{network_forward.1} parent=39 // pred_fallthru
        _
    $region40: #{network_forward.1} parent=5 // pred_fallthru
      _
    %p1388 = scmp.le.s32.totalorder 2, %s11
    // Predicated region
    $region45: #{network_forward.1} parent=5 // pred_check
      %p1389 = pneg %p1388
    $region46: #{network_forward.1} parent=5 // pred_check_branch
      %1391 = sbr.rel (%p1389) target = $region48
    $region47: #{network_forward.1} parent=5 // pred_region
      %s1392 = ssub.s32 %s11, 2
      // Predicated region
      $region49: #{network_forward.1} parent=47 // pred_check
        %p1393 = pneg %p150
      $region50: #{network_forward.1} parent=47 // pred_check_branch
        %1395 = sbr.rel (%p1393) target = $region52
      $region51: #{network_forward.1} parent=47 // pred_region
        %s1396 = smul.u32 32, %s17
        %p1397 = scmp.lt.s32.totalorder %s1396, 63
        %s1398 = scalar_select %p1397, %s1396, 63
        %s1399 = smul.addr %s1398, 8
        %s1400 = scalar_lea.vmem %s5, %s1399
      $region52: #{network_forward.1} parent=47 // pred_fallthru
        _
    $region48: #{network_forward.1} parent=5 // pred_fallthru
      _
  $region6: #{network_forward.1} parent=0 // loop_footer
    %s15 = sadd.s32 1, %s11
  $region7: #{network_forward.1} parent=0 // loop_footer_branch
    %10 = sbr.rel target = $region3
  $region8: #{network_forward.1} parent=0 // loop_exit
    _

</llo_original>
